<compile_context>
chip_gen: v5e
topology: v5e:2x2
jax: 0.10.0
libtpu: 0.0.40
codegen_flags: <defaults>
</compile_context>

<pallas_src>
import functools

import jax
import jax.numpy as jnp
from jax import lax
from jax.experimental import pallas as pl
from jax.experimental.pallas import tpu as pltpu

LANE = 128          # lane width (last dim of every block)
SUBLANE = 8         # f32 sublane tile
PAD_LOGIT = -200.0  # sentinel logit: exp(-200) == 0 in f32 -> exactly 0 loss


def _sublane_multiple(dtype):
    """Packed sublane tile height for a dtype (8 for f32, 16 for bf16, ...)."""
    bits = jnp.dtype(dtype).itemsize * 8
    return max(SUBLANE, (SUBLANE * 32) // bits)


def _num_tensorcores():
    """Best-effort TensorCore count per chip (perf knob only; correctness is
    unaffected if this guesses wrong — a too-large value just serializes)."""
    try:
        info = pltpu.get_tpu_info()
        for attr in ("num_tensorcores", "tensorcore_count", "num_cores",
                     "cores_per_chip", "core_count"):
            v = getattr(info, attr, None)
            if isinstance(v, int) and v >= 1:
                return max(1, min(2, v))
    except Exception:
        pass
    try:
        kind = jax.devices()[0].device_kind.lower()
    except Exception:
        return 1
    # Dual-TensorCore / megacore chips; v5e / v6e are single-TC.
    if any(tag in kind for tag in ("v4", "v5p", "7")):
        return 2
    return 1


def _bce_blur_kernel(pred_ref, true_ref, out_ref, *, inv_alpha, rows, tm,
                     needs_mask):
    c = pl.program_id(0)
    j = pl.program_id(1)

    @pl.when(j == 0)
    def _init():
        out_ref[...] = jnp.zeros_like(out_ref)

    x = pred_ref[...].astype(jnp.float32)
    y = true_ref[...].astype(jnp.float32)

    if needs_mask:
        # Replace out-of-range rows with the (sentinel, 0) pair -> exactly 0
        # loss contribution, regardless of whatever the partial DMA left in
        # the OOB part of the block.  Pure VPU work; only compiled in when the
        # logical row count doesn't fill the grid.
        row0 = (c * pl.num_programs(1) + j) * tm
        rid = lax.broadcasted_iota(jnp.int32, (tm, LANE), 0) + row0
        valid = rid < rows
        x = jnp.where(valid, x, PAD_LOGIT)
        y = jnp.where(valid, y, 0.0)

    # BCEWithLogitsLoss(reduction='none'), numerically stable:
    #   max(x, 0) - x*y + log1p(exp(-|x|))
    e = jnp.exp(-jnp.abs(x))                      # reused below for sigmoid
    bce = jnp.maximum(x, 0.0) - x * y + jnp.log1p(e)

    # sigmoid(x) reusing e = exp(-|x|):  x>=0: 1/(1+e)   x<0: e/(1+e)
    p = jnp.where(x >= 0.0, 1.0, e) * pl.reciprocal(1.0 + e, approx=True)
    dx = p - y
    alpha_factor = 1.0 - jnp.exp((dx - 1.0) * inv_alpha)
    contrib = bce * alpha_factor                  # (tm, LANE) f32

    # Sublane-group reduction into the tiny resident output block: plain
    # vector adds across vregs (no XLU), no per-step (tm,128) VMEM round-trip.
    out_ref[...] += jnp.sum(
        contrib.reshape(tm // SUBLANE, SUBLANE, LANE), axis=0)


def bce_blur_with_logits_loss(pred, true, alpha=0.05, tm_max=4096):
    """Scalar mean loss matching BCEBlurWithLogitsLoss.forward."""
    assert pred.shape == true.shape
    n = pred.size
    assert 0 < n < 2**31

    pf = pred.reshape(-1)
    tf = true.reshape(-1)

    # Only the ragged lane tail (n % 128) ever needs padding now.
    rem = (-n) % LANE
    if rem:
        pf = jnp.pad(pf, (0, rem), constant_values=PAD_LOGIT)
        tf = jnp.pad(tf, (0, rem), constant_values=0)
    rows = (n + rem) // LANE
    pf = pf.reshape(rows, LANE)
    tf = tf.reshape(rows, LANE)

    sub = max(_sublane_multiple(pred.dtype), _sublane_multiple(true.dtype))
    nc = max(1, min(_num_tensorcores(), max(1, rows // sub)))
    rows_per_core = pl.cdiv(rows, nc)
    tm_cap = max(sub, (tm_max // sub) * sub)
    tm = min(tm_cap, pl.cdiv(rows_per_core, sub) * sub)
    steps = pl.cdiv(rows_per_core, tm)
    needs_mask = (nc * steps * tm) != rows  # row-tail handled in-kernel

    kernel = functools.partial(
        _bce_blur_kernel,
        inv_alpha=1.0 / (alpha + 0.0001),
        rows=rows,
        tm=tm,
        needs_mask=needs_mask,
    )

    out = pl.pallas_call(
        kernel,
        out_shape=jax.ShapeDtypeStruct((nc * SUBLANE, LANE), jnp.float32),
        grid_spec=pltpu.PrefetchScalarGridSpec(
            num_scalar_prefetch=0,
            grid=(nc, steps),
            in_specs=[
                pl.BlockSpec((tm, LANE), lambda c, j: (c * steps + j, 0)),
                pl.BlockSpec((tm, LANE), lambda c, j: (c * steps + j, 0)),
            ],
            out_specs=pl.BlockSpec((SUBLANE, LANE), lambda c, j: (c, 0)),
        ),
        compiler_params=pltpu.CompilerParams(
            dimension_semantics=("parallel", "arbitrary"),
            vmem_limit_bytes=32 * 1024 * 1024,
        ),
    )(pf, tf)

    # Tiny (nc*8, 128) partial -> scalar mean (uses the true element count).
    return jnp.sum(out) / n


def _reference(pred, true, alpha=0.05):
    x = pred.astype(jnp.float32)
    y = true.astype(jnp.float32)
    bce = jnp.maximum(x, 0.0) - x * y + jnp.log1p(jnp.exp(-jnp.abs(x)))
    p = jax.nn.sigmoid(x)
    dx = p - y
    af = 1.0 - jnp.exp((dx - 1.0) / (alpha + 0.0001))
    return jnp.mean(bce * af)


if __name__ == "__main__":
    key = jax.random.PRNGKey(0)
    k1, k2, k3, k4 = jax.random.split(key, 4)

    # Primary case (NCHW logits/targets), lane-aligned.
    pred = jax.random.normal(k1, (2, 4, 16, 16), dtype=jnp.float32)
    true = jax.random.uniform(k2, (2, 4, 16, 16), dtype=jnp.float32)
    out = jax.block_until_ready(bce_blur_with_logits_loss(pred, true))
    ref = _reference(pred, true)
    assert jnp.allclose(out, ref, rtol=1e-3, atol=1e-6), (out, ref)

    # Row-tail case: size is a multiple of 128 but not of the row tile
    # (9600 elems -> 75 rows) — exercises the in-kernel mask, no jnp.pad.
    p2 = jax.random.normal(k3, (2, 3, 40, 40), dtype=jnp.float32)
    t2 = jax.random.uniform(k4, (2, 3, 40, 40), dtype=jnp.float32)
    out2 = jax.block_until_ready(bce_blur_with_logits_loss(p2, t2))
    ref2 = _reference(p2, t2)
    assert jnp.allclose(out2, ref2, rtol=1e-3, atol=1e-6), (out2, ref2)

    # Ragged lane tail (n = 1155, not a multiple of 128).
    p3 = jax.random.normal(k1, (3, 5, 7, 11), dtype=jnp.float32)
    t3 = jax.random.uniform(k2, (3, 5, 7, 11), dtype=jnp.float32)
    out3 = jax.block_until_ready(bce_blur_with_logits_loss(p3, t3))
    ref3 = _reference(p3, t3)
    assert jnp.allclose(out3, ref3, rtol=1e-3, atol=1e-6), (out3, ref3)

    # bf16 pass-through (native-dtype HBM traffic, f32 math on-chip).
    p4 = pred.astype(jnp.bfloat16)
    t4 = true.astype(jnp.bfloat16)
    out4 = jax.block_until_ready(bce_blur_with_logits_loss(p4, t4))
    ref4 = _reference(p4, t4)
    assert jnp.allclose(out4, ref4, rtol=1e-3, atol=1e-6), (out4, ref4)

    print("KERNEL_OK")
</pallas_src>

<mosaic_0001>
module attributes {stable_mosaic.version = 11 : i64} {
  func.func @_bce_blur_kernel(%arg0: i32, %arg1: i32, %arg2: memref<16x128xf32, #tpu.memory_space<vmem>>, %arg3: memref<16x128xf32, #tpu.memory_space<vmem>>, %arg4: memref<8x128xf32, #tpu.memory_space<vmem>>) attributes {dimension_semantics = [#tpu.dimension_semantics<parallel>, #tpu.dimension_semantics<arbitrary>], iteration_bounds = array<i64: 1, 1>, scalar_prefetch = 0 : i64, scratch_operands = 0 : i64, tpu.core_type = #tpu.core_type<tc>, window_params = [{transform_indices = @transform_0, window_bounds = array<i64: 16, 128>}, {transform_indices = @transform_1, window_bounds = array<i64: 16, 128>}, {transform_indices = @transform_2, window_bounds = array<i64: 8, 128>}]} {
    %c0_i32 = arith.constant 0 : i32
    %0 = arith.cmpi eq, %arg1, %c0_i32 : i32
    %1 = arith.extui %0 : i1 to i32
    %c0_i32_0 = arith.constant 0 : i32
    %2 = arith.cmpi ne, %1, %c0_i32_0 : i32
    scf.if %2 {
      %cst_16 = arith.constant 0.000000e+00 : f32
      %37 = vector.broadcast %cst_16 : f32 to vector<8x128xf32>
      %c0_17 = arith.constant 0 : index
      %c0_18 = arith.constant 0 : index
      %38 = vector.load %arg4[%c0_17, %c0_18] : memref<8x128xf32, #tpu.memory_space<vmem>>, vector<8x128xf32>
      tpu.vector_store %arg4[%c0_17, %c0_18], %37 {strides = array<i32>} : memref<8x128xf32, #tpu.memory_space<vmem>>, vector<8x128xf32>,
    } else {
    }
    %c0 = arith.constant 0 : index
    %c0_1 = arith.constant 0 : index
    %3 = vector.load %arg2[%c0, %c0_1] : memref<16x128xf32, #tpu.memory_space<vmem>>, vector<16x128xf32>
    %c0_2 = arith.constant 0 : index
    %c0_3 = arith.constant 0 : index
    %4 = vector.load %arg3[%c0_2, %c0_3] : memref<16x128xf32, #tpu.memory_space<vmem>>, vector<16x128xf32>
    %5 = math.absf %3 : vector<16x128xf32>
    %cst = arith.constant 0.000000e+00 : f32
    %6 = vector.broadcast %cst : f32 to vector<16x128xf32>
    %7 = arith.subf %6, %5 : vector<16x128xf32>
    %8 = math.exp %7 : vector<16x128xf32>
    %cst_4 = arith.constant 0.000000e+00 : f32
    %9 = vector.broadcast %cst_4 : f32 to vector<16x128xf32>
    %10 = arith.maximumf %3, %9 : vector<16x128xf32>
    %11 = arith.mulf %3, %4 : vector<16x128xf32>
    %12 = arith.subf %10, %11 : vector<16x128xf32>
    %13 = math.log1p %8 : vector<16x128xf32>
    %14 = arith.addf %12, %13 : vector<16x128xf32>
    %cst_5 = arith.constant 0.000000e+00 : f32
    %15 = vector.broadcast %cst_5 : f32 to vector<16x128xf32>
    %16 = arith.cmpf oge, %3, %15 : vector<16x128xf32>
    %cst_6 = arith.constant 1.000000e+00 : f32
    %17 = vector.broadcast %cst_6 : f32 to vector<16x128xf32>
    %18 = arith.select %16, %17, %8 : vector<16x128xi1>, vector<16x128xf32>
    %cst_7 = arith.constant 1.000000e+00 : f32
    %19 = vector.broadcast %cst_7 : f32 to vector<16x128xf32>
    %20 = arith.addf %19, %8 : vector<16x128xf32>
    %21 = tpu.reciprocal %20 {approx = true} : vector<16x128xf32> -> vector<16x128xf32>
    %22 = arith.mulf %18, %21 : vector<16x128xf32>
    %23 = arith.subf %22, %4 : vector<16x128xf32>
    %cst_8 = arith.constant 1.000000e+00 : f32
    %24 = vector.broadcast %cst_8 : f32 to vector<16x128xf32>
    %25 = arith.subf %23, %24 : vector<16x128xf32>
    %cst_9 = arith.constant 19.9600792 : f32
    %26 = vector.broadcast %cst_9 : f32 to vector<16x128xf32>
    %27 = arith.mulf %25, %26 : vector<16x128xf32>
    %28 = math.exp %27 : vector<16x128xf32>
    %cst_10 = arith.constant 1.000000e+00 : f32
    %29 = vector.broadcast %cst_10 : f32 to vector<16x128xf32>
    %30 = arith.subf %29, %28 : vector<16x128xf32>
    %31 = arith.mulf %14, %30 : vector<16x128xf32>
    %c0_11 = arith.constant 0 : index
    %c0_12 = arith.constant 0 : index
    %32 = vector.load %arg4[%c0_11, %c0_12] : memref<8x128xf32, #tpu.memory_space<vmem>>, vector<8x128xf32>
    %33 = vector.shape_cast %31 : vector<16x128xf32> to vector<2x8x128xf32>
    %cst_13 = arith.constant dense<0.000000e+00> : vector<8x128xf32>
    %34 = vector.multi_reduction <add>, %33, %cst_13 [0] : vector<2x8x128xf32> to vector<8x128xf32>
    %35 = arith.addf %32, %34 : vector<8x128xf32>
    %c0_14 = arith.constant 0 : index
    %c0_15 = arith.constant 0 : index
    %36 = vector.load %arg4[%c0_14, %c0_15] : memref<8x128xf32, #tpu.memory_space<vmem>>, vector<8x128xf32>
    tpu.vector_store %arg4[%c0_14, %c0_15], %35 {strides = array<i32>} : memref<8x128xf32, #tpu.memory_space<vmem>>, vector<8x128xf32>,
    return
  }
  func.func @transform_0(%arg0: i32, %arg1: i32) -> (i32, i32) {
    %c1_i32 = arith.constant 1 : i32
    %0 = arith.muli %arg0, %c1_i32 : i32
    %1 = arith.addi %0, %arg1 : i32
    %c0_i32 = arith.constant 0 : i32
    %c0_i32_0 = arith.constant 0 : i32
    return %1, %c0_i32 : i32, i32
  }
  func.func @transform_1(%arg0: i32, %arg1: i32) -> (i32, i32) {
    %c1_i32 = arith.constant 1 : i32
    %0 = arith.muli %arg0, %c1_i32 : i32
    %1 = arith.addi %0, %arg1 : i32
    %c0_i32 = arith.constant 0 : i32
    %c0_i32_0 = arith.constant 0 : i32
    return %1, %c0_i32 : i32, i32
  }
  func.func @transform_2(%arg0: i32, %arg1: i32) -> (i32, i32) {
    %c0_i32 = arith.constant 0 : i32
    %c0_i32_0 = arith.constant 0 : i32
    return %arg0, %c0_i32 : i32, i32
  }
}

</mosaic_0001>

<llo_original>
// kernel: tpu_custom_call.1
$region0: #{tpu_custom_call.1}
  #allocation0 [shape = 'u32[]', space=smem, size = 0x4, offset = 0x4, fixed_abs, tag = 'smem constant byte address 0x4 - core index']
  #allocation1 [shape = 'u32[72,128]{1,0:T(1,128)}', space=vmem, size = 0x9000, scoped, tag = 'internal scratch']
  %s0 = inlined_call_operand.hbm [shape: f32[16,128], index: 0, kind: input, shape index: {}]
  %s1 = inlined_call_operand.hbm [shape: f32[16,128], index: 1, kind: input, shape index: {}]
  %s2 = inlined_call_operand.hbm [shape: f32[8,128], index: 2, kind: output, shape index: {}]
  %s3 = sld [smem:[#allocation0]]
  $region30: #{tpu_custom_call.1} parent=0
    _
  %s5 = ssub.s32 1, %s3
  %s6 = scalar_select 0, %s5, %s3
  $region1: #{tpu_custom_call.1} parent=0
    #allocation2 [shape = 'u8[8192]{0}', space=vmem, size = 0x2000, scoped, tag = 'input window, operand 0, single buffered']
    #allocation3 [shape = 's32[1]{0}', space=sflag, size = 0x4, scoped, tag = 'scoped memory for tpu_custom_call.1']
    #allocation4 [shape = 's32[1]{0}', space=sflag, size = 0x4, scoped, tag = 'scoped memory for tpu_custom_call.1']
    #allocation5 [shape = 'u8[8192]{0}', space=vmem, size = 0x2000, scoped, tag = 'input window, operand 1, single buffered']
    #allocation6 [shape = 's32[1]{0}', space=sflag, size = 0x4, scoped, tag = 'scoped memory for tpu_custom_call.1']
    #allocation7 [shape = 'u8[4096]{0}', space=vmem, size = 0x1000, scoped, tag = 'output window, operand 0, single buffered']
    %7 = vsyncpa [#allocation3], 0
    %8 = vsyncpa [#allocation6], 0
    %9 = vsyncpa [#allocation4], 0
    // Predicated region
    $region2: #{tpu_custom_call.1} parent=1 // pred_check
      _
    $region3: #{tpu_custom_call.1} parent=1 // pred_check_branch
      %11 = sbr.rel (0) target = $region5
    $region4: #{tpu_custom_call.1} parent=1 // pred_region
      %s12 = sadd.s32 0, 0
      %s13 = smul.u32 2, %s12
      %15 = vsyncadd [#allocation3], 0
      %s16 = smul.addr %s13, 8
      %s17 = scalar_lea.hbm %s0, %s16
      %s18 = sshll.u32 %s17, 4
      %s19 = int_to_ptr.hbm [resolvable:$true] %s18
      %s20 = sshll.u32 [#allocation2], 4
      %s21 = int_to_ptr.vmem [resolvable:$true] %s20
      %26 = dma.hbm_to_vmem [thread:$0]  %s19, 256, %s21, [#allocation3], 128, 128, 8
    $region5: #{tpu_custom_call.1} parent=1 // pred_fallthru
      _
    // Predicated region
    $region6: #{tpu_custom_call.1} parent=1 // pred_check
      _
    $region7: #{tpu_custom_call.1} parent=1 // pred_check_branch
      %28 = sbr.rel (0) target = $region9
    $region8: #{tpu_custom_call.1} parent=1 // pred_region
      %s29 = sadd.s32 0, 0
      %s30 = smul.u32 2, %s29
      %32 = vsyncadd [#allocation6], 0
      %s33 = smul.addr %s30, 8
      %s34 = scalar_lea.hbm %s1, %s33
      %s35 = sshll.u32 %s34, 4
      %s36 = int_to_ptr.hbm [resolvable:$true] %s35
      %s37 = sshll.u32 [#allocation5], 4
      %s38 = int_to_ptr.vmem [resolvable:$true] %s37
      %43 = dma.hbm_to_vmem [thread:$0]  %s36, 256, %s38, [#allocation6], 128, 128, 8
    $region9: #{tpu_custom_call.1} parent=1 // pred_fallthru
      _
    // Predicated region
    $region10: #{tpu_custom_call.1} parent=1 // pred_check
      _
    $region11: #{tpu_custom_call.1} parent=1 // pred_check_branch
      %45 = sbr.rel (0) target = $region13
    $region12: #{tpu_custom_call.1} parent=1 // pred_region
      %47 = dma.done [#allocation3], 256
    $region13: #{tpu_custom_call.1} parent=1 // pred_fallthru
      _
    // Predicated region
    $region14: #{tpu_custom_call.1} parent=1 // pred_check
      _
    $region15: #{tpu_custom_call.1} parent=1 // pred_check_branch
      %49 = sbr.rel (0) target = $region17
    $region16: #{tpu_custom_call.1} parent=1 // pred_region
      %51 = dma.done [#allocation6], 256
    $region17: #{tpu_custom_call.1} parent=1 // pred_fallthru
      _
    %s52 = sadd.s32 0, 0
    %s53 = smul.u32 2, %s52
    %s54 = sadd.s32 0, 0
    %s55 = smul.u32 2, %s54
    %p56 = scmp.eq.s32.totalorder 0, 0
    // Predicated region
    $region18: #{tpu_custom_call.1} parent=1 // pred_check
      %p57 = pneg %p56
    $region19: #{tpu_custom_call.1} parent=1 // pred_check_branch
      %59 = sbr.rel (%p57) target = $region21
    $region20: #{tpu_custom_call.1} parent=1 // pred_region
      %60 = vst [vmem:[#allocation7] sm:$0xff] 0.0
    $region21: #{tpu_custom_call.1} parent=1 // pred_fallthru
      _
    %v61 = vld [vmem:[#allocation2] sm:$0xff]
    %v62 = vld [vmem:[#allocation2 + $0x8] sm:$0xff]
    %v63 = vld [vmem:[#allocation5] sm:$0xff]
    %v64 = vld [vmem:[#allocation5 + $0x8] sm:$0xff]
    %v65 = vand.u32 2147483647, %v61
    %v66 = vand.u32 2147483647, %v62
    %v67 = vsub.f32 0.0, %v65
    %v68 = vsub.f32 0.0, %v66
    %v69 = vmul.f32 %v67, 1.442695
    %v70 = vpow.pop %v69
    %v71 = vmul.f32 %v68, 1.442695
    %v72 = vpow.pop %v71
    %v73 = vmax.f32 %v61, 0.0
    %v74 = vmax.f32 %v62, 0.0
    %v75 = vmul.f32 %v61, %v63
    %v76 = vmul.f32 %v62, %v64
    %v77 = vsub.f32 %v73, %v75
    %v78 = vsub.f32 %v74, %v76
    %v79 = vadd.f32 %v70, 1.0
    %v80 = vlog2.pop %v79
    %v81 = vmul.f32 %v80, 0.6931472
    %v82 = vmul.f32 -0.5, %v70
    %v83 = vadd.f32 %v82, 1.0
    %v84 = vmul.f32 %v83, %v70
    %v85 = vand.u32 2147483647, %v70
    %vm86 = vcmp.lt.f32.partialorder %v85, 0.0004427343
    %v87 = vsel %vm86, %v84, %v81
    %v88 = vadd.f32 %v72, 1.0
    %v89 = vlog2.pop %v88
    %v90 = vmul.f32 %v89, 0.6931472
    %v91 = vmul.f32 -0.5, %v72
    %v92 = vadd.f32 %v91, 1.0
    %v93 = vmul.f32 %v92, %v72
    %v94 = vand.u32 2147483647, %v72
    %vm95 = vcmp.lt.f32.partialorder %v94, 0.0004427343
    %v96 = vsel %vm95, %v93, %v90
    %v97 = vadd.f32 %v77, %v87
    %v98 = vadd.f32 %v78, %v96
    %vm99 = vcmp.ge.f32.partialorder %v61, 0.0
    %vm100 = vcmp.ge.f32.partialorder %v62, 0.0
    %v101 = vsel %vm99, 1.0, %v70
    %v102 = vsel %vm100, 1.0, %v72
    %v103 = vadd.f32 %v70, 1.0
    %v104 = vadd.f32 %v72, 1.0
    %v105 = vrcp.pop %v103
    %v106 = vrcp.pop %v104
    %v107 = vmul.f32 %v101, %v105
    %v108 = vmul.f32 %v102, %v106
    %v109 = vsub.f32 %v107, %v63
    %v110 = vsub.f32 %v108, %v64
    %v111 = vsub.f32 %v109, 1.0
    %v112 = vsub.f32 %v110, 1.0
    %v113 = vmul.f32 %v111, 19.96008
    %v114 = vmul.f32 %v112, 19.96008
    %v115 = vmul.f32 %v113, 1.442695
    %v116 = vpow.pop %v115
    %v117 = vmul.f32 %v114, 1.442695
    %v118 = vpow.pop %v117
    %v119 = vsub.f32 1.0, %v116
    %v120 = vsub.f32 1.0, %v118
    %v121 = vmul.f32 %v97, %v119
    %v122 = vmul.f32 %v98, %v120
    %v123 = vld [vmem:[#allocation7] sm:$0xff]
    %v124 = vadd.f32 %v121, %v122
    %v125 = vadd.f32 %v123, %v124
    %126 = vst [vmem:[#allocation7] sm:$0xff] %v125
    // Predicated region
    $region22: #{tpu_custom_call.1} parent=1 // pred_check
      _
    $region23: #{tpu_custom_call.1} parent=1 // pred_check_branch
      %128 = sbr.rel (0) target = $region25
    $region24: #{tpu_custom_call.1} parent=1 // pred_region
      %130 = vsyncadd [#allocation4], 0
      %s132 = sshll.u32 [#allocation7], 4
      %s133 = int_to_ptr.vmem [resolvable:$true] %s132
      %s134 = sshll.u32 %s2, 4
      %s135 = int_to_ptr.hbm [resolvable:$true] %s134
      %137 = dma.vmem_to_hbm [thread:$0]  %s133, 128, %s135, [#allocation4]
    $region25: #{tpu_custom_call.1} parent=1 // pred_fallthru
      _
    // Predicated region
    $region26: #{tpu_custom_call.1} parent=1 // pred_check
      _
    $region27: #{tpu_custom_call.1} parent=1 // pred_check_branch
      %139 = sbr.rel (0) target = $region29
    $region28: #{tpu_custom_call.1} parent=1 // pred_region
      %141 = dma.done [#allocation4], 128
    $region29: #{tpu_custom_call.1} parent=1 // pred_fallthru
      _
    %142 = vsyncpa [#allocation3], 1
    %143 = vsyncpa [#allocation6], 1
    %144 = vsyncpa [#allocation4], 1

</llo_original>
